<compile_context>
chip_gen: v7x
topology: tpu7x:2x2x1
jax: 0.10.0
libtpu: 0.0.40
codegen_flags: <defaults>
</compile_context>

<pallas_src>
import functools

import jax
import jax.numpy as jnp
from jax import lax
from jax.experimental import pallas as pl
from jax.experimental.pallas import tpu as pltpu

_LANES = 128
_SUBLANES = 8
_CHUNK_ROWS = 64       # <=64-row compute slices: ~8 vregs per f32 intermediate
_PAD_LOGIT = -1e4      # large finite negative: exp->0, log1p->0, sigmoid->0 (not -inf: avoids inf*0)


def _round_up(a: int, b: int) -> int:
    return -(-a // b) * b


def _dice_bce_kernel(x_ref, t_ref, o_ref, *,
                     rows: int, tile_r: int, chunk_r: int,
                     blocks_per_core: int, approx: bool):
    """Accumulate [bce_sum, sum(p*t), sum(p+t)] partials into o_ref (1, 3, 8, 128)."""
    c = pl.program_id(0)            # core / "parallel" axis
    i = pl.program_id(1)            # reduction / "arbitrary" axis

    @pl.when(i == 0)
    def _init():
        o_ref[...] = jnp.zeros_like(o_ref)

    # Logical first row covered by this grid step.  For redundant tail steps (whose
    # block index was clamped in the index_map) this is >= rows -> fully masked below.
    row_off = (c * blocks_per_core + i) * tile_r

    # Hoisted once per grid step and reused by every chunk (no broadcast in the loop).
    row_iota = lax.broadcasted_iota(jnp.int32, (chunk_r, _LANES), 0)
    num_chunks = tile_r // chunk_r

    def chunk(j, carry):
        start = pl.multiple_of(j * chunk_r, chunk_r)
        # Rows whose global index >= rows are out-of-bounds garbage (partial last
        # block); replace them with a sentinel that contributes exactly 0 everywhere.
        valid = row_iota < (rows - row_off - j * chunk_r)

        x = x_ref[pl.ds(start, chunk_r), :].astype(jnp.float32)
        t = t_ref[pl.ds(start, chunk_r), :].astype(jnp.float32)
        x = jnp.where(valid, x, _PAD_LOGIT)
        t = jnp.where(valid, t, 0.0)

        # Shared transcendental: e = exp(-|x|) feeds both the BCE log1p and sigmoid.
        e = jnp.exp(-jnp.abs(x))
        # Numerically stable BCE-with-logits: max(x,0) - x*t + log1p(exp(-|x|))
        bce = jnp.maximum(x, 0.0) - x * t + jnp.log1p(e)
        # sigmoid(x) = [x>=0: 1, x<0: e] / (1 + e)
        num = jnp.where(x >= 0.0, 1.0, e)
        if approx:
            p = num * pl.reciprocal(1.0 + e, approx=True)   # EUP slot, not a VALU divide
        else:
            p = num / (1.0 + e)

        def fold(v):   # (chunk_r, 128) -> (8, 128): pure vreg-wise VALU adds
            return jnp.sum(v.reshape(chunk_r // _SUBLANES, _SUBLANES, _LANES), axis=0)

        o_ref[0, 0] += fold(bce)
        o_ref[0, 1] += fold(p * t)
        o_ref[0, 2] += fold(p + t)   # only p_sum + t_sum is needed for the dice denom
        return carry

    lax.fori_loop(0, num_chunks, chunk, 0, unroll=min(num_chunks, 8))


def dice_bce_loss(logits, target, *, tile_rows: int = 8192, num_cores: int = 1,
                  buffer_count: int = 2, approx_sigmoid: bool = True):
    """Pallas-backed DiceBCELoss forward. Returns a float32 scalar.

    tile_rows   : sweep knob (rows of 128 lanes per grid step). 8192 is a good default
                  for v6e/v7x; 2048-4096 is already ample on v5e.
    num_cores   : set to 2 on dual-TensorCore parts (v7x / megacore) to split the
                  reduction across cores; correct (just sequential) on 1-TC chips.
    buffer_count: input pipeline depth (sweep 2 vs 3 on v7x).
    """
    assert logits.size == target.size, "logits/target element counts must match"
    x = logits.reshape(-1)
    t = target.reshape(-1)
    if t.dtype == jnp.bool_:
        t = t.astype(jnp.int8)      # keep the mask 1 byte on the wire
    n = x.shape[0]

    # ---- (rows, 128) layout; zero-copy on the common path ------------------------
    n_p = max(_round_up(n, _LANES), _SUBLANES * _LANES)
    pad = n_p - n
    if pad:
        # TODO(synk): only taken when numel % 128 != 0 (or numel < 1024): this is a
        # full-copy pad. Ragged *rows* are handled in-kernel with masking (no copy).
        x = jnp.pad(x, (0, pad), constant_values=_PAD_LOGIT)
        t = jnp.pad(t, (0, pad), constant_values=0)
    rows = n_p // _LANES
    x2 = x.reshape(rows, _LANES)
    t2 = t.reshape(rows, _LANES)

    # ---- tile selection: biggest block within the VMEM budget --------------------
    num_cores = max(1, int(num_cores))
    in_bytes_per_row = _LANES * (x2.dtype.itemsize + t2.dtype.itemsize) * buffer_count
    vmem_input_budget = 24 << 20                 # conservative for v7x's 64 MiB VMEM
    cap = max(_SUBLANES, min(int(tile_rows), vmem_input_budget // in_bytes_per_row, rows))
    cap -= cap % _SUBLANES
    if cap > _CHUNK_ROWS:
        cap -= cap % _CHUNK_ROWS                 # keep the tile divisible by the chunk
    tile_r = cap
    chunk_r = min(_CHUNK_ROWS, tile_r)

    total_blocks = pl.cdiv(rows, tile_r)
    blocks_per_core = pl.cdiv(total_blocks, num_cores)
    grid = (num_cores, blocks_per_core)

    def in_index(c, i):
        b = c * blocks_per_core + i
        return (jnp.minimum(b, total_blocks - 1), 0)   # clamp redundant tail steps

    spec_kwargs = {}
    if buffer_count != 2:
        spec_kwargs["pipeline_mode"] = pl.Buffered(buffer_count)
    in_specs = [pl.BlockSpec((tile_r, _LANES), in_index, **spec_kwargs),
                pl.BlockSpec((tile_r, _LANES), in_index, **spec_kwargs)]

    # Explicit scoped-VMEM limit: v5e's default (16 MiB) is too small for large tiles.
    vmem_limit = int(min(max(in_bytes_per_row * tile_r + (8 << 20), 32 << 20), 60 << 20))

    kernel = functools.partial(_dice_bce_kernel, rows=rows, tile_r=tile_r,
                               chunk_r=chunk_r, blocks_per_core=blocks_per_core,
                               approx=approx_sigmoid)

    partials = pl.pallas_call(
        kernel,
        out_shape=jax.ShapeDtypeStruct((num_cores, 3, _SUBLANES, _LANES), jnp.float32),
        grid_spec=pltpu.PrefetchScalarGridSpec(
            num_scalar_prefetch=0,
            grid=grid,
            in_specs=in_specs,
            out_specs=pl.BlockSpec((1, 3, _SUBLANES, _LANES), lambda c, i: (c, 0, 0, 0)),
        ),
        compiler_params=pltpu.CompilerParams(
            dimension_semantics=("parallel", "arbitrary"),
            vmem_limit_bytes=vmem_limit,
        ),
    )(x2, t2)

    # Tiny final combine (per review: fold the per-core partials in the wrapper).
    sums = jnp.sum(partials, axis=(0, 2, 3))     # [bce_sum, intersection, p_sum + t_sum]
    bce_mean = sums[0] / n                       # BCEWithLogitsLoss default: mean
    dice = (2.0 * sums[1] + 1.0) / (sums[2] + 1.0)
    return bce_mean + (1.0 - dice)


def _reference(logits, target):
    x = logits.reshape(-1).astype(jnp.float32)
    t = target.reshape(-1).astype(jnp.float32)
    bce = jnp.mean(jnp.maximum(x, 0.0) - x * t + jnp.log1p(jnp.exp(-jnp.abs(x))))
    p = jax.nn.sigmoid(x)
    dice = (2.0 * jnp.sum(p * t) + 1.0) / (jnp.sum(p) + jnp.sum(t) + 1.0)
    return bce + (1.0 - dice)


if __name__ == "__main__":
    key = jax.random.PRNGKey(0)
    k0, k1, k2, k3 = jax.random.split(key, 4)

    def make(shape, k):
        ka, kb = jax.random.split(k)
        logits = jax.random.normal(ka, shape, dtype=jnp.float32)
        target = (jax.random.uniform(kb, shape) > 0.5).astype(jnp.float32)
        return logits, target

    # A) default path; bf16 target on the wire (in real use the mask is produced in
    #    bf16/int8 upstream — the cast here only exercises the narrow-dtype path).
    logits, target = make((2, 4, 16, 16), k0)
    ref = _reference(logits, target)
    loss = dice_bce_loss(logits, target.astype(jnp.bfloat16))
    jax.block_until_ready(loss)
    assert jnp.allclose(loss, ref, rtol=2e-3, atol=2e-3), (loss, ref)  # approx recip tol

    # B) exact-sigmoid path.
    loss = dice_bce_loss(logits, target, approx_sigmoid=False)
    jax.block_until_ready(loss)
    assert jnp.allclose(loss, ref, rtol=1e-4, atol=1e-4), (loss, ref)

    # C) multi-block reduction + partial (masked) last block + redundant clamped step
    #    on a 2-core split (sequential but correct on single-TensorCore chips).
    logits, target = make((2, 5, 16, 16), k1)        # 2560 elems -> 20 rows, 3 blocks of 8
    ref = _reference(logits, target)
    loss = dice_bce_loss(logits, target, tile_rows=8, num_cores=2, approx_sigmoid=False)
    jax.block_until_ready(loss)
    assert jnp.allclose(loss, ref, rtol=1e-4, atol=1e-4), (loss, ref)

    # D) ragged numel (not a multiple of 128): pad-fallback path.
    logits, target = make((2, 3, 15, 15), k2)        # 1350 elems
    ref = _reference(logits, target)
    loss = dice_bce_loss(logits, target, approx_sigmoid=False)
    jax.block_until_ready(loss)
    assert jnp.allclose(loss, ref, rtol=1e-4, atol=1e-4), (loss, ref)

    # E) multi-chunk inner loop (rows > 64 -> several 64-row compute chunks per tile).
    logits, target = make((2, 4, 64, 64), k3)        # 32768 elems -> 256 rows, 4 chunks
    ref = _reference(logits, target)
    loss = dice_bce_loss(logits, target, approx_sigmoid=False)
    jax.block_until_ready(loss)
    assert jnp.allclose(loss, ref, rtol=1e-4, atol=1e-4), (loss, ref)

    print("KERNEL_OK")
</pallas_src>

<mosaic_0001>
module attributes {stable_mosaic.version = 11 : i64} {
  func.func @_dice_bce_kernel(%arg0: i32, %arg1: i32, %arg2: memref<16x128xf32, #tpu.memory_space<vmem>>, %arg3: memref<16x128xbf16, #tpu.memory_space<vmem>>, %arg4: memref<1x3x8x128xf32, #tpu.memory_space<vmem>>) attributes {dimension_semantics = [#tpu.dimension_semantics<parallel>, #tpu.dimension_semantics<arbitrary>], iteration_bounds = array<i64: 1, 1>, scalar_prefetch = 0 : i64, scratch_operands = 0 : i64, tpu.core_type = #tpu.core_type<tc>, window_params = [{transform_indices = @transform_0, window_bounds = array<i64: 16, 128>}, {transform_indices = @transform_1, window_bounds = array<i64: 16, 128>}, {transform_indices = @transform_2, window_bounds = array<i64: 1, 3, 8, 128>}]} {
    %c0_i32 = arith.constant 0 : i32
    %0 = arith.cmpi eq, %arg1, %c0_i32 : i32
    %1 = arith.extui %0 : i1 to i32
    %c0_i32_0 = arith.constant 0 : i32
    %2 = arith.cmpi ne, %1, %c0_i32_0 : i32
    scf.if %2 {
      %cst_38 = arith.constant 0.000000e+00 : f32
      %67 = vector.broadcast %cst_38 : f32 to vector<1x3x8x128xf32>
      %c0_39 = arith.constant 0 : index
      %c0_40 = arith.constant 0 : index
      %c0_41 = arith.constant 0 : index
      %c0_42 = arith.constant 0 : index
      %68 = vector.load %arg4[%c0_39, %c0_40, %c0_41, %c0_42] : memref<1x3x8x128xf32, #tpu.memory_space<vmem>>, vector<1x3x8x128xf32>
      tpu.vector_store %arg4[%c0_39, %c0_40, %c0_41, %c0_42], %67 {strides = array<i32>} : memref<1x3x8x128xf32, #tpu.memory_space<vmem>>, vector<1x3x8x128xf32>,
    } else {
    }
    %c1_i32 = arith.constant 1 : i32
    %3 = arith.muli %arg0, %c1_i32 : i32
    %4 = arith.addi %3, %arg1 : i32
    %c16_i32 = arith.constant 16 : i32
    %5 = arith.muli %4, %c16_i32 : i32
    %6 = tpu.iota {dimensions = array<i32: 0>} : vector<16x128xi32>
    %c0_i32_1 = arith.constant 0 : i32
    %c16_i32_2 = arith.constant 16 : i32
    %7 = arith.muli %c0_i32_1, %c16_i32_2 : i32
    %8 = tpu.assume_multiple %7, 16 : i32
    %c16_i32_3 = arith.constant 16 : i32
    %9 = arith.subi %c16_i32_3, %5 : i32
    %c16_i32_4 = arith.constant 16 : i32
    %10 = arith.muli %c0_i32_1, %c16_i32_4 : i32
    %11 = arith.subi %9, %10 : i32
    %12 = vector.broadcast %11 : i32 to vector<16x128xi32>
    %13 = arith.cmpi slt, %6, %12 : vector<16x128xi32>
    %14 = arith.index_cast %8 : i32 to index
    %c0 = arith.constant 0 : index
    %15 = vector.load %arg2[%14, %c0] : memref<16x128xf32, #tpu.memory_space<vmem>>, vector<16x128xf32>
    %16 = arith.index_cast %8 : i32 to index
    %c0_5 = arith.constant 0 : index
    %17 = vector.load %arg3[%16, %c0_5] : memref<16x128xbf16, #tpu.memory_space<vmem>>, vector<16x128xbf16>
    %18 = arith.extf %17 : vector<16x128xbf16> to vector<16x128xf32>
    %cst = arith.constant -1.000000e+04 : f32
    %19 = vector.broadcast %cst : f32 to vector<16x128xf32>
    %20 = arith.select %13, %15, %19 : vector<16x128xi1>, vector<16x128xf32>
    %cst_6 = arith.constant 0.000000e+00 : f32
    %21 = vector.broadcast %cst_6 : f32 to vector<16x128xf32>
    %22 = arith.select %13, %18, %21 : vector<16x128xi1>, vector<16x128xf32>
    %23 = math.absf %20 : vector<16x128xf32>
    %cst_7 = arith.constant 0.000000e+00 : f32
    %24 = vector.broadcast %cst_7 : f32 to vector<16x128xf32>
    %25 = arith.subf %24, %23 : vector<16x128xf32>
    %26 = math.exp %25 : vector<16x128xf32>
    %cst_8 = arith.constant 0.000000e+00 : f32
    %27 = vector.broadcast %cst_8 : f32 to vector<16x128xf32>
    %28 = arith.maximumf %20, %27 : vector<16x128xf32>
    %29 = arith.mulf %20, %22 : vector<16x128xf32>
    %30 = arith.subf %28, %29 : vector<16x128xf32>
    %31 = math.log1p %26 : vector<16x128xf32>
    %32 = arith.addf %30, %31 : vector<16x128xf32>
    %cst_9 = arith.constant 0.000000e+00 : f32
    %33 = vector.broadcast %cst_9 : f32 to vector<16x128xf32>
    %34 = arith.cmpf oge, %20, %33 : vector<16x128xf32>
    %cst_10 = arith.constant 1.000000e+00 : f32
    %35 = vector.broadcast %cst_10 : f32 to vector<16x128xf32>
    %36 = arith.select %34, %35, %26 : vector<16x128xi1>, vector<16x128xf32>
    %cst_11 = arith.constant 1.000000e+00 : f32
    %37 = vector.broadcast %cst_11 : f32 to vector<16x128xf32>
    %38 = arith.addf %37, %26 : vector<16x128xf32>
    %39 = tpu.reciprocal %38 {approx = true} : vector<16x128xf32> -> vector<16x128xf32>
    %40 = arith.mulf %36, %39 : vector<16x128xf32>
    %c0_12 = arith.constant 0 : index
    %c0_13 = arith.constant 0 : index
    %c0_14 = arith.constant 0 : index
    %c0_15 = arith.constant 0 : index
    %41 = vector.load %arg4[%c0_12, %c0_13, %c0_14, %c0_15] : memref<1x3x8x128xf32, #tpu.memory_space<vmem>>, vector<1x1x8x128xf32>
    %42 = vector.shape_cast %41 : vector<1x1x8x128xf32> to vector<8x128xf32>
    %43 = vector.shape_cast %32 : vector<16x128xf32> to vector<2x8x128xf32>
    %cst_16 = arith.constant dense<0.000000e+00> : vector<8x128xf32>
    %44 = vector.multi_reduction <add>, %43, %cst_16 [0] : vector<2x8x128xf32> to vector<8x128xf32>
    %45 = arith.addf %42, %44 : vector<8x128xf32>
    %c0_17 = arith.constant 0 : index
    %c0_18 = arith.constant 0 : index
    %c0_19 = arith.constant 0 : index
    %c0_20 = arith.constant 0 : index
    %46 = vector.load %arg4[%c0_17, %c0_18, %c0_19, %c0_20] : memref<1x3x8x128xf32, #tpu.memory_space<vmem>>, vector<1x1x8x128xf32>
    %47 = vector.shape_cast %46 : vector<1x1x8x128xf32> to vector<8x128xf32>
    %48 = vector.shape_cast %45 : vector<8x128xf32> to vector<1x1x8x128xf32>
    tpu.vector_store %arg4[%c0_17, %c0_18, %c0_19, %c0_20], %48 {strides = array<i32>} : memref<1x3x8x128xf32, #tpu.memory_space<vmem>>, vector<1x1x8x128xf32>,
    %c0_21 = arith.constant 0 : index
    %c1 = arith.constant 1 : index
    %c0_22 = arith.constant 0 : index
    %c0_23 = arith.constant 0 : index
    %49 = vector.load %arg4[%c0_21, %c1, %c0_22, %c0_23] : memref<1x3x8x128xf32, #tpu.memory_space<vmem>>, vector<1x1x8x128xf32>
    %50 = vector.shape_cast %49 : vector<1x1x8x128xf32> to vector<8x128xf32>
    %51 = arith.mulf %40, %22 : vector<16x128xf32>
    %52 = vector.shape_cast %51 : vector<16x128xf32> to vector<2x8x128xf32>
    %cst_24 = arith.constant dense<0.000000e+00> : vector<8x128xf32>
    %53 = vector.multi_reduction <add>, %52, %cst_24 [0] : vector<2x8x128xf32> to vector<8x128xf32>
    %54 = arith.addf %50, %53 : vector<8x128xf32>
    %c0_25 = arith.constant 0 : index
    %c1_26 = arith.constant 1 : index
    %c0_27 = arith.constant 0 : index
    %c0_28 = arith.constant 0 : index
    %55 = vector.load %arg4[%c0_25, %c1_26, %c0_27, %c0_28] : memref<1x3x8x128xf32, #tpu.memory_space<vmem>>, vector<1x1x8x128xf32>
    %56 = vector.shape_cast %55 : vector<1x1x8x128xf32> to vector<8x128xf32>
    %57 = vector.shape_cast %54 : vector<8x128xf32> to vector<1x1x8x128xf32>
    tpu.vector_store %arg4[%c0_25, %c1_26, %c0_27, %c0_28], %57 {strides = array<i32>} : memref<1x3x8x128xf32, #tpu.memory_space<vmem>>, vector<1x1x8x128xf32>,
    %c0_29 = arith.constant 0 : index
    %c2 = arith.constant 2 : index
    %c0_30 = arith.constant 0 : index
    %c0_31 = arith.constant 0 : index
    %58 = vector.load %arg4[%c0_29, %c2, %c0_30, %c0_31] : memref<1x3x8x128xf32, #tpu.memory_space<vmem>>, vector<1x1x8x128xf32>
    %59 = vector.shape_cast %58 : vector<1x1x8x128xf32> to vector<8x128xf32>
    %60 = arith.addf %40, %22 : vector<16x128xf32>
    %61 = vector.shape_cast %60 : vector<16x128xf32> to vector<2x8x128xf32>
    %cst_32 = arith.constant dense<0.000000e+00> : vector<8x128xf32>
    %62 = vector.multi_reduction <add>, %61, %cst_32 [0] : vector<2x8x128xf32> to vector<8x128xf32>
    %63 = arith.addf %59, %62 : vector<8x128xf32>
    %c0_33 = arith.constant 0 : index
    %c2_34 = arith.constant 2 : index
    %c0_35 = arith.constant 0 : index
    %c0_36 = arith.constant 0 : index
    %64 = vector.load %arg4[%c0_33, %c2_34, %c0_35, %c0_36] : memref<1x3x8x128xf32, #tpu.memory_space<vmem>>, vector<1x1x8x128xf32>
    %65 = vector.shape_cast %64 : vector<1x1x8x128xf32> to vector<8x128xf32>
    %66 = vector.shape_cast %63 : vector<8x128xf32> to vector<1x1x8x128xf32>
    tpu.vector_store %arg4[%c0_33, %c2_34, %c0_35, %c0_36], %66 {strides = array<i32>} : memref<1x3x8x128xf32, #tpu.memory_space<vmem>>, vector<1x1x8x128xf32>,
    %c1_i32_37 = arith.constant 1 : i32
    return
  }
  func.func @transform_0(%arg0: i32, %arg1: i32) -> (i32, i32) {
    %c1_i32 = arith.constant 1 : i32
    %0 = arith.muli %arg0, %c1_i32 : i32
    %1 = arith.addi %0, %arg1 : i32
    %c0_i32 = arith.constant 0 : i32
    %2 = arith.minsi %1, %c0_i32 : i32
    %c0_i32_0 = arith.constant 0 : i32
    %c0_i32_1 = arith.constant 0 : i32
    return %2, %c0_i32_0 : i32, i32
  }
  func.func @transform_1(%arg0: i32, %arg1: i32) -> (i32, i32) {
    %c1_i32 = arith.constant 1 : i32
    %0 = arith.muli %arg0, %c1_i32 : i32
    %1 = arith.addi %0, %arg1 : i32
    %c0_i32 = arith.constant 0 : i32
    %2 = arith.minsi %1, %c0_i32 : i32
    %c0_i32_0 = arith.constant 0 : i32
    %c0_i32_1 = arith.constant 0 : i32
    return %2, %c0_i32_0 : i32, i32
  }
  func.func @transform_2(%arg0: i32, %arg1: i32) -> (i32, i32, i32, i32) {
    %c0_i32 = arith.constant 0 : i32
    %c0_i32_0 = arith.constant 0 : i32
    %c0_i32_1 = arith.constant 0 : i32
    %c0_i32_2 = arith.constant 0 : i32
    return %arg0, %c0_i32, %c0_i32_0, %c0_i32_1 : i32, i32, i32, i32
  }
}

</mosaic_0001>

<llo_original>
// kernel: tpu_custom_call.1
$region0: #{tpu_custom_call.1}
  #allocation0 [shape = 'u32[]', space=smem, size = 0x4, offset = 0x4, fixed_abs, tag = 'smem constant byte address 0x4 - core index']
  #allocation1 [shape = 'u32[144,128]{1,0:T(1,128)}', space=vmem, size = 0x12000, scoped, tag = 'internal scratch']
  %s0 = inlined_call_operand.hbm [shape: f32[16,128], index: 0, kind: input, shape index: {}]
  %s1 = inlined_call_operand.hbm [shape: bf16[16,128], index: 1, kind: input, shape index: {}]
  %s2 = inlined_call_operand.hbm [shape: f32[1,3,8,128], index: 2, kind: output, shape index: {}]
  %s3 = sld [smem:[#allocation0]]
  $region30: #{tpu_custom_call.1} parent=0
    _
  %s5 = ssub.s32 1, %s3
  %s6 = scalar_select 0, %s5, %s3
  $region1: #{tpu_custom_call.1} parent=0
    #allocation2 [shape = 'u8[8192]{0}', space=vmem, size = 0x2000, scoped, tag = 'input window, operand 0, single buffered']
    #allocation3 [shape = 's32[1]{0}', space=sflag, size = 0x4, scoped, tag = 'scoped memory for tpu_custom_call.1']
    #allocation4 [shape = 's32[1]{0}', space=sflag, size = 0x4, scoped, tag = 'scoped memory for tpu_custom_call.1']
    #allocation5 [shape = 'u8[4096]{0}', space=vmem, size = 0x1000, scoped, tag = 'input window, operand 1, single buffered']
    #allocation6 [shape = 's32[1]{0}', space=sflag, size = 0x4, scoped, tag = 'scoped memory for tpu_custom_call.1']
    #allocation7 [shape = 'u8[12288]{0}', space=vmem, size = 0x3000, scoped, tag = 'output window, operand 0, single buffered']
    %7 = vsyncpa [#allocation3], 0
    %8 = vsyncpa [#allocation6], 0
    %9 = vsyncpa [#allocation4], 0
    // Predicated region
    $region2: #{tpu_custom_call.1} parent=1 // pred_check
      _
    $region3: #{tpu_custom_call.1} parent=1 // pred_check_branch
      %11 = sbr.rel (0) target = $region5
    $region4: #{tpu_custom_call.1} parent=1 // pred_region
      %s12 = sadd.s32 0, 0
      %p13 = scmp.lt.s32.totalorder %s12, 0
      %s14 = scalar_select %p13, %s12, 0
      %s15 = smul.u32 2, %s14
      %s17 = ssub.s32 256, 256
      %18 = vsyncadd [#allocation3], %s17
      %s19 = smul.addr %s15, 128
      %s20 = scalar_lea.hbm %s0, %s19
      %s21 = sshll.u32 [#allocation2], 4
      %s22 = int_to_ptr.vmem [resolvable:$true] %s21
      %27 = dma.hbm_to_vmem [thread:$0]  %s20, 256, %s22, [#allocation3], 128, 128, 8
    $region5: #{tpu_custom_call.1} parent=1 // pred_fallthru
      _
    // Predicated region
    $region6: #{tpu_custom_call.1} parent=1 // pred_check
      _
    $region7: #{tpu_custom_call.1} parent=1 // pred_check_branch
      %29 = sbr.rel (0) target = $region9
    $region8: #{tpu_custom_call.1} parent=1 // pred_region
      %s30 = sadd.s32 0, 0
      %p31 = scmp.lt.s32.totalorder %s30, 0
      %s32 = scalar_select %p31, %s30, 0
      %s33 = smul.u32 2, %s32
      %s35 = ssub.s32 128, 128
      %36 = vsyncadd [#allocation6], %s35
      %s37 = smul.addr %s33, 64
      %s38 = scalar_lea.hbm %s1, %s37
      %s39 = sshll.u32 [#allocation5], 4
      %s40 = int_to_ptr.vmem [resolvable:$true] %s39
      %45 = dma.hbm_to_vmem [thread:$0]  %s38, 128, %s40, [#allocation6], 64, 64, 4
    $region9: #{tpu_custom_call.1} parent=1 // pred_fallthru
      _
    // Predicated region
    $region10: #{tpu_custom_call.1} parent=1 // pred_check
      _
    $region11: #{tpu_custom_call.1} parent=1 // pred_check_branch
      %47 = sbr.rel (0) target = $region13
    $region12: #{tpu_custom_call.1} parent=1 // pred_region
      %48 = dma.done [#allocation3], 256
    $region13: #{tpu_custom_call.1} parent=1 // pred_fallthru
      _
    // Predicated region
    $region14: #{tpu_custom_call.1} parent=1 // pred_check
      _
    $region15: #{tpu_custom_call.1} parent=1 // pred_check_branch
      %50 = sbr.rel (0) target = $region17
    $region16: #{tpu_custom_call.1} parent=1 // pred_region
      %51 = dma.done [#allocation6], 128
    $region17: #{tpu_custom_call.1} parent=1 // pred_fallthru
      _
    %s52 = sadd.s32 0, 0
    %p53 = scmp.lt.s32.totalorder %s52, 0
    %s54 = scalar_select %p53, %s52, 0
    %s55 = smul.u32 2, %s54
    %s56 = sadd.s32 0, 0
    %p57 = scmp.lt.s32.totalorder %s56, 0
    %s58 = scalar_select %p57, %s56, 0
    %s59 = smul.u32 2, %s58
    %p60 = scmp.eq.s32.totalorder 0, 0
    // Predicated region
    $region18: #{tpu_custom_call.1} parent=1 // pred_check
      %p61 = pneg %p60
    $region19: #{tpu_custom_call.1} parent=1 // pred_check_branch
      %63 = sbr.rel (%p61) target = $region21
    $region20: #{tpu_custom_call.1} parent=1 // pred_region
      %64 = vst [vmem:[#allocation7] sm:$0xff] 0.0
      %65 = vst [vmem:[#allocation7 + $0x8] sm:$0xff] 0.0
      %66 = vst [vmem:[#allocation7 + $0x10] sm:$0xff] 0.0
    $region21: #{tpu_custom_call.1} parent=1 // pred_fallthru
      _
    %s67 = sadd.s32 0, 0
    %s68 = smul.u32 %s67, 16
    %v69 = vlaneseq
    %v70 = vshrl.u32 %v69, 7
    %v71 = vadd.s32 %v70, 8
    %s72 = ssub.s32 16, %s68
    %v73 = vstv %s72
    %vm74 = vcmp.lt.s32.totalorder %v70, %v73
    %vm75 = vcmp.lt.s32.totalorder %v71, %v73
    %v76 = vld [vmem:[#allocation2] sm:$0xff]
    %v77 = vld [vmem:[#allocation2 + $0x8] sm:$0xff]
    %v78 = vld [vmem:[#allocation5] sm:$0xf]
    %v79 = vld [vmem:[#allocation5 + $0x4] sm:$0xf]
    %v80 = vunpack.c.l.bf16 %v78
    %v81 = vunpack.c.l.bf16 %v79
    %v82 = vsel %vm74, %v76, -10000.0
    %v83 = vsel %vm75, %v77, -10000.0
    %v84 = vsel %vm74, %v80, 0.0
    %v85 = vsel %vm75, %v81, 0.0
    %v86 = vand.u32 2147483647, %v82
    %v87 = vand.u32 2147483647, %v83
    %v88 = vsub.f32 0.0, %v86
    %v89 = vsub.f32 0.0, %v87
    %v90 = vmul.f32 %v88, 1.442695
    %v91 = vpow.pop %v90
    %v92 = vmul.f32 %v89, 1.442695
    %v93 = vpow.pop %v92
    %v94 = vmax.f32 %v82, 0.0
    %v95 = vmax.f32 %v83, 0.0
    %v96 = vmul.f32 %v82, %v84
    %v97 = vmul.f32 %v83, %v85
    %v98 = vsub.f32 %v94, %v96
    %v99 = vsub.f32 %v95, %v97
    %v100 = vadd.f32 %v91, 1.0
    %v101 = vlog2.pop %v100
    %v102 = vmul.f32 %v101, 0.6931472
    %v103 = vmul.f32 -0.5, %v91
    %v104 = vadd.f32 %v103, 1.0
    %v105 = vmul.f32 %v104, %v91
    %v106 = vand.u32 2147483647, %v91
    %vm107 = vcmp.lt.f32.partialorder %v106, 0.0004427343
    %v108 = vsel %vm107, %v105, %v102
    %v109 = vadd.f32 %v93, 1.0
    %v110 = vlog2.pop %v109
    %v111 = vmul.f32 %v110, 0.6931472
    %v112 = vmul.f32 -0.5, %v93
    %v113 = vadd.f32 %v112, 1.0
    %v114 = vmul.f32 %v113, %v93
    %v115 = vand.u32 2147483647, %v93
    %vm116 = vcmp.lt.f32.partialorder %v115, 0.0004427343
    %v117 = vsel %vm116, %v114, %v111
    %v118 = vadd.f32 %v98, %v108
    %v119 = vadd.f32 %v99, %v117
    %vm120 = vcmp.ge.f32.partialorder %v82, 0.0
    %vm121 = vcmp.ge.f32.partialorder %v83, 0.0
    %v122 = vsel %vm120, 1.0, %v91
    %v123 = vsel %vm121, 1.0, %v93
    %v124 = vadd.f32 %v91, 1.0
    %v125 = vadd.f32 %v93, 1.0
    %v126 = vrcp.pop %v124
    %v127 = vrcp.pop %v125
    %v128 = vmul.f32 %v122, %v126
    %v129 = vmul.f32 %v123, %v127
    %v130 = vld [vmem:[#allocation7] sm:$0xff]
    %v131 = vadd.f32 %v118, %v119
    %v132 = vadd.f32 %v130, %v131
    %133 = vst [vmem:[#allocation7] sm:$0xff] %v132
    %s134 = scalar_lea.vmem [#allocation7], 8
    %v135 = vld [vmem:[%s134] sm:$0xff]
    %v136 = vmul.f32 %v128, %v84
    %v137 = vmul.f32 %v129, %v85
    %v138 = vadd.f32 %v136, %v137
    %v139 = vadd.f32 %v135, %v138
    %140 = vst [vmem:[%s134] sm:$0xff] %v139
    %s141 = scalar_lea.vmem [#allocation7], 16
    %v142 = vld [vmem:[%s141] sm:$0xff]
    %v143 = vadd.f32 %v128, %v84
    %v144 = vadd.f32 %v129, %v85
    %v145 = vadd.f32 %v143, %v144
    %v146 = vadd.f32 %v142, %v145
    %147 = vst [vmem:[%s141] sm:$0xff] %v146
    // Predicated region
    $region22: #{tpu_custom_call.1} parent=1 // pred_check
      _
    $region23: #{tpu_custom_call.1} parent=1 // pred_check_branch
      %149 = sbr.rel (0) target = $region25
    $region24: #{tpu_custom_call.1} parent=1 // pred_region
      %s151 = ssub.s32 384, 384
      %152 = vsyncadd [#allocation4], %s151
      %s153 = sshll.u32 [#allocation7], 4
      %s154 = int_to_ptr.vmem [resolvable:$true] %s153
      %159 = dma.vmem_to_hbm [thread:$0]  %s154, 384, %s2, [#allocation4], 128, 128, 8
    $region25: #{tpu_custom_call.1} parent=1 // pred_fallthru
      _
    // Predicated region
    $region26: #{tpu_custom_call.1} parent=1 // pred_check
      _
    $region27: #{tpu_custom_call.1} parent=1 // pred_check_branch
      %161 = sbr.rel (0) target = $region29
    $region28: #{tpu_custom_call.1} parent=1 // pred_region
      %162 = dma.done [#allocation4], 384
    $region29: #{tpu_custom_call.1} parent=1 // pred_fallthru
      _
    %163 = vsyncpa [#allocation3], 1
    %164 = vsyncpa [#allocation6], 1
    %165 = vsyncpa [#allocation4], 1

</llo_original>
